<compile_context>
chip_gen: v7x
topology: tpu7x:2x2x1
jax: 0.10.0
libtpu: 0.0.40
codegen_flags: <defaults>
</compile_context>

<pallas_src>
import jax
import jax.numpy as jnp
from jax import lax
from jax.experimental import pallas as pl
from jax.experimental.pallas import tpu as pltpu

LANES = 128
SUBLANES = 8


def _hw_config():
    """Return (tensorcores_per_device, per-input tile budget bytes, physical VMEM bytes)."""
    kind = ""
    try:
        kind = (jax.devices()[0].device_kind or "").lower()
    except Exception:
        pass

    # Megacore parts (v4 / v5p / v7x) expose 2 TensorCores behind one device and
    # shard "parallel" grid axes across them; v2/v3/v5e/v6e have 1 TC.
    ncores = 2 if any(t in kind for t in ("v7", "v4", "v5p")) else 1
    phys_vmem = (64 << 20) if "v7" in kind else (128 << 20)

    # Prefer an explicit hardware query when available (attribute names are
    # probed defensively so this never raises across jax versions).
    try:
        info = pltpu.get_tpu_info()
        for attr in ("tensorcores_per_chip", "num_tensorcores", "num_cores", "core_count"):
            v = getattr(info, attr, None)
            if isinstance(v, int) and v >= 1:
                ncores = v
                break
        pv = getattr(info, "vmem_capacity_bytes", None)
        if isinstance(pv, int) and pv > 0:
            phys_vmem = pv
    except Exception:
        pass

    # Per-input tile budget: 2 MiB on v5e / unknown parts (fits the 16 MiB
    # default scoped-VMEM limit even without the explicit override), 4 MiB on
    # v6e / v4 / v5p / v7x (v7x has only 64 MiB physical VMEM, so we do not go
    # bigger than 2 inputs x 2 buffers x 4 MiB = 16 MiB of windows).
    if ("v5 lite" in kind) or ("v5e" in kind) or not kind:
        tile_bytes = 2 << 20
    else:
        tile_bytes = 4 << 20
    return ncores, tile_bytes, phys_vmem


def _make_l2_kernel(*, block_rows, fold_rows, num_blocks, inner_blocks,
                    num_full_blocks, valid_rows_last):
    folds = block_rows // fold_rows

    def kernel(x_ref, y_ref, o_ref):
        c = pl.program_id(0)          # core-split axis ("parallel" on 2-TC parts)
        i = pl.program_id(1)          # reduction axis ("arbitrary")
        gb = c * inner_blocks + i     # global (unclamped) block index

        # o_ref is the per-core (fold_rows, 128) f32 accumulator, resident in
        # VMEM across the whole reduction axis.
        @pl.when(i == 0)
        def _():
            o_ref[...] = jnp.zeros_like(o_ref)

        def accumulate(sq):
            # (block_rows, 128) -> (fold_rows, 128): sums over whole vregs, i.e.
            # pure VPU vadds with up to fold_rows/8 independent accumulation
            # chains (no per-step cross-lane XLU work, no latency-bound chain).
            folded = sq.reshape(folds, fold_rows, LANES).sum(axis=0)
            o_ref[...] += folded

        # Full, fully-in-range blocks: unmasked fast path.
        @pl.when(gb < num_full_blocks)
        def _():
            d = y_ref[...].astype(jnp.float32) - x_ref[...].astype(jnp.float32)
            accumulate(d * d)

        if valid_rows_last is not None:
            # The single partial tail block: mask rows beyond the valid range
            # (Pallas leaves out-of-bounds rows of the VMEM tile undefined;
            # NaN/Inf in the unselected branch does not propagate through where).
            @pl.when(gb == num_blocks - 1)
            def _():
                d = y_ref[...].astype(jnp.float32) - x_ref[...].astype(jnp.float32)
                row = lax.broadcasted_iota(jnp.int32, (block_rows, LANES), 0)
                accumulate(jnp.where(row < valid_rows_last, d * d, 0.0))

        # Blocks with gb >= num_blocks (the one clamped duplicate step that can
        # appear only when num_blocks is odd and split across 2 cores) fall
        # through both branches and contribute nothing.

    return kernel


def l2_loss(x: jax.Array, y: jax.Array, *, max_tile_bytes: int | None = None) -> jax.Array:
    """mean((y - x)**2) over all elements, matching torch MSE semantics."""
    assert x.shape == y.shape, (x.shape, y.shape)
    n = x.size
    assert n > 0

    ncores_hw, tile_bytes_hw, phys_vmem = _hw_config()
    if max_tile_bytes is None:
        max_tile_bytes = tile_bytes_hw

    itemsize = max(jnp.dtype(x.dtype).itemsize, jnp.dtype(y.dtype).itemsize)

    # Flatten in the original dtype (free bitcast for contiguous arrays).  The
    # kernel consumes only the lane-aligned prefix; the <128-element misaligned
    # tail (if any) is summed by a tiny wrapper reduce -- no full-array pad copy.
    xf = x.reshape(-1)
    yf = y.reshape(-1)
    rem = n % LANES
    full = n - rem
    rows = full // LANES

    tail_sum = jnp.float32(0.0)
    if rem:
        xt = xf[full:].astype(jnp.float32)
        yt = yf[full:].astype(jnp.float32)
        tail_sum = jnp.sum((yt - xt) * (yt - xt))

    if rows == 0:
        # Fewer than 128 elements: wrapper handles everything.
        return tail_sum / jnp.float32(n)

    x2d = (xf if rem == 0 else xf[:full]).reshape(rows, LANES)
    y2d = (yf if rem == 0 else yf[:full]).reshape(rows, LANES)

    # Tile sizing: as large as the per-generation budget allows, amortizing the
    # ~0.35us per-grid-step overhead.
    max_block_rows = max(
        SUBLANES, (max_tile_bytes // (LANES * itemsize)) // SUBLANES * SUBLANES
    )
    rows_padded8 = ((rows + SUBLANES - 1) // SUBLANES) * SUBLANES
    block_rows = min(max_block_rows, rows_padded8)

    # Multi-accumulator fold width: prefer 64 rows (8 parallel f32 vreg chains),
    # falling back so that block_rows % fold_rows == 0 always holds.
    fold_rows = SUBLANES
    for cand in (8 * SUBLANES, 4 * SUBLANES, 2 * SUBLANES):
        if block_rows % cand == 0:
            fold_rows = cand
            break

    num_blocks = pl.cdiv(rows, block_rows)
    has_partial = (rows % block_rows) != 0
    num_full_blocks = num_blocks - 1 if has_partial else num_blocks
    valid_rows_last = (rows - (num_blocks - 1) * block_rows) if has_partial else None

    # Split the reduction across TensorCores only on megacore parts (v4/v5p/v7x);
    # on 1-TC chips this collapses so no wasted clamped steps are paid.
    ncores = min(ncores_hw, num_blocks)
    inner_blocks = pl.cdiv(num_blocks, ncores)

    def in_map(c, i):
        # Clamp so the possible one extra step on the last core never issues an
        # out-of-bounds block DMA; its compute is skipped in-kernel.
        return (jnp.minimum(c * inner_blocks + i, num_blocks - 1), 0)

    kernel = _make_l2_kernel(
        block_rows=block_rows,
        fold_rows=fold_rows,
        num_blocks=num_blocks,
        inner_blocks=inner_blocks,
        num_full_blocks=num_full_blocks,
        valid_rows_last=valid_rows_last,
    )

    # Explicit scoped-VMEM budget: 2 inputs x 2 pipeline buffers of the input
    # window, plus headroom for the f32 cast/square temporaries of sub-32-bit
    # inputs, capped below physical VMEM (64 MiB on v7x).
    block_in_bytes = block_rows * LANES * itemsize
    f32_block_bytes = block_rows * LANES * 4
    vmem_limit = 2 * 2 * block_in_bytes + 4 * f32_block_bytes + (2 << 20)
    vmem_limit = max(vmem_limit, 16 << 20)
    vmem_limit = min(vmem_limit, max(16 << 20, phys_vmem - (8 << 20)))

    core_sem = "parallel" if ncores > 1 else "arbitrary"

    partials = pl.pallas_call(
        kernel,
        out_shape=jax.ShapeDtypeStruct((ncores * fold_rows, LANES), jnp.float32),
        grid_spec=pltpu.PrefetchScalarGridSpec(
            num_scalar_prefetch=0,
            grid=(ncores, inner_blocks),
            in_specs=[
                pl.BlockSpec((block_rows, LANES), in_map),
                pl.BlockSpec((block_rows, LANES), in_map),
            ],
            out_specs=pl.BlockSpec((fold_rows, LANES), lambda c, i: (c, 0)),
        ),
        compiler_params=pltpu.CompilerParams(
            dimension_semantics=(core_sem, "arbitrary"),
            vmem_limit_bytes=int(vmem_limit),
        ),
        cost_estimate=pl.CostEstimate(
            flops=3 * full,
            transcendentals=0,
            bytes_accessed=full
            * (jnp.dtype(x.dtype).itemsize + jnp.dtype(y.dtype).itemsize)
            + ncores * fold_rows * LANES * 4,
        ),
    )(x2d, y2d)

    # Tiny final cross-lane reduce + mean (true element count, torch semantics).
    return (jnp.sum(partials) + tail_sum) / jnp.float32(n)


if __name__ == "__main__":
    key = jax.random.PRNGKey(0)
    kx, ky = jax.random.split(key)

    # Small NCHW-like shape consistent with a reconstruction loss.
    shape = (2, 4, 16, 16)
    x = jax.random.normal(kx, shape, dtype=jnp.float32)
    y = jax.random.normal(ky, shape, dtype=jnp.float32)

    out = jax.block_until_ready(l2_loss(x, y))
    ref = jnp.mean((y - x) ** 2)
    assert jnp.allclose(out, ref, rtol=1e-5, atol=1e-6), (out, ref)

    # Exercise the multi-block / partial-block / misaligned-tail / bf16 /
    # multi-accumulator-fold paths with an awkward shape and a small tile cap.
    shape2 = (3, 5, 17, 19)  # numel = 4845 (not a multiple of 128)
    x2 = jax.random.normal(kx, shape2, dtype=jnp.bfloat16)
    y2 = jax.random.normal(ky, shape2, dtype=jnp.bfloat16)
    out2 = jax.block_until_ready(l2_loss(x2, y2, max_tile_bytes=8 * 1024))
    ref2 = jnp.mean((y2.astype(jnp.float32) - x2.astype(jnp.float32)) ** 2)
    assert jnp.allclose(out2, ref2, rtol=1e-4, atol=1e-5), (out2, ref2)

    print("KERNEL_OK")
</pallas_src>

<mosaic_0001>
module attributes {stable_mosaic.version = 11 : i64} {
  func.func @kernel(%arg0: i32, %arg1: i32, %arg2: memref<16x128xf32, #tpu.memory_space<vmem>>, %arg3: memref<16x128xf32, #tpu.memory_space<vmem>>, %arg4: memref<16x128xf32, #tpu.memory_space<vmem>>) attributes {dimension_semantics = [#tpu.dimension_semantics<arbitrary>, #tpu.dimension_semantics<arbitrary>], iteration_bounds = array<i64: 1, 1>, scalar_prefetch = 0 : i64, scratch_operands = 0 : i64, tpu.core_type = #tpu.core_type<tc>, window_params = [{transform_indices = @transform_0, window_bounds = array<i64: 16, 128>}, {transform_indices = @transform_1, window_bounds = array<i64: 16, 128>}, {transform_indices = @transform_2, window_bounds = array<i64: 16, 128>}]} {
    %c1_i32 = arith.constant 1 : i32
    %0 = arith.muli %arg0, %c1_i32 : i32
    %1 = arith.addi %0, %arg1 : i32
    %c0_i32 = arith.constant 0 : i32
    %2 = arith.cmpi eq, %arg1, %c0_i32 : i32
    %3 = arith.extui %2 : i1 to i32
    %c0_i32_0 = arith.constant 0 : i32
    %4 = arith.cmpi ne, %3, %c0_i32_0 : i32
    scf.if %4 {
      %cst = arith.constant 0.000000e+00 : f32
      %8 = vector.broadcast %cst : f32 to vector<16x128xf32>
      %c0 = arith.constant 0 : index
      %c0_3 = arith.constant 0 : index
      %9 = vector.load %arg4[%c0, %c0_3] : memref<16x128xf32, #tpu.memory_space<vmem>>, vector<16x128xf32>
      tpu.vector_store %arg4[%c0, %c0_3], %8 {strides = array<i32>} : memref<16x128xf32, #tpu.memory_space<vmem>>, vector<16x128xf32>,
    } else {
    }
    %c1_i32_1 = arith.constant 1 : i32
    %5 = arith.cmpi slt, %1, %c1_i32_1 : i32
    %6 = arith.extui %5 : i1 to i32
    %c0_i32_2 = arith.constant 0 : i32
    %7 = arith.cmpi ne, %6, %c0_i32_2 : i32
    scf.if %7 {
      %c0 = arith.constant 0 : index
      %c0_3 = arith.constant 0 : index
      %8 = vector.load %arg3[%c0, %c0_3] : memref<16x128xf32, #tpu.memory_space<vmem>>, vector<16x128xf32>
      %c0_4 = arith.constant 0 : index
      %c0_5 = arith.constant 0 : index
      %9 = vector.load %arg2[%c0_4, %c0_5] : memref<16x128xf32, #tpu.memory_space<vmem>>, vector<16x128xf32>
      %10 = arith.subf %8, %9 : vector<16x128xf32>
      %11 = arith.mulf %10, %10 : vector<16x128xf32>
      %12 = vector.shape_cast %11 : vector<16x128xf32> to vector<1x16x128xf32>
      %cst = arith.constant dense<0.000000e+00> : vector<16x128xf32>
      %13 = vector.multi_reduction <add>, %12, %cst [0] : vector<1x16x128xf32> to vector<16x128xf32>
      %c0_6 = arith.constant 0 : index
      %c0_7 = arith.constant 0 : index
      %14 = vector.load %arg4[%c0_6, %c0_7] : memref<16x128xf32, #tpu.memory_space<vmem>>, vector<16x128xf32>
      %15 = arith.addf %14, %13 : vector<16x128xf32>
      %c0_8 = arith.constant 0 : index
      %c0_9 = arith.constant 0 : index
      %16 = vector.load %arg4[%c0_8, %c0_9] : memref<16x128xf32, #tpu.memory_space<vmem>>, vector<16x128xf32>
      tpu.vector_store %arg4[%c0_8, %c0_9], %15 {strides = array<i32>} : memref<16x128xf32, #tpu.memory_space<vmem>>, vector<16x128xf32>,
    } else {
    }
    return
  }
  func.func @transform_0(%arg0: i32, %arg1: i32) -> (i32, i32) {
    %c1_i32 = arith.constant 1 : i32
    %0 = arith.muli %arg0, %c1_i32 : i32
    %1 = arith.addi %0, %arg1 : i32
    %c0_i32 = arith.constant 0 : i32
    %2 = arith.minsi %1, %c0_i32 : i32
    %c0_i32_0 = arith.constant 0 : i32
    %c0_i32_1 = arith.constant 0 : i32
    return %2, %c0_i32_0 : i32, i32
  }
  func.func @transform_1(%arg0: i32, %arg1: i32) -> (i32, i32) {
    %c1_i32 = arith.constant 1 : i32
    %0 = arith.muli %arg0, %c1_i32 : i32
    %1 = arith.addi %0, %arg1 : i32
    %c0_i32 = arith.constant 0 : i32
    %2 = arith.minsi %1, %c0_i32 : i32
    %c0_i32_0 = arith.constant 0 : i32
    %c0_i32_1 = arith.constant 0 : i32
    return %2, %c0_i32_0 : i32, i32
  }
  func.func @transform_2(%arg0: i32, %arg1: i32) -> (i32, i32) {
    %c0_i32 = arith.constant 0 : i32
    %c0_i32_0 = arith.constant 0 : i32
    return %arg0, %c0_i32 : i32, i32
  }
}

</mosaic_0001>

<llo_original>
// kernel: tpu_custom_call.1
$region0: #{tpu_custom_call.1}
  #allocation0 [shape = 'u32[]', space=smem, size = 0x4, offset = 0x4, fixed_abs, tag = 'smem constant byte address 0x4 - core index']
  #allocation1 [shape = 'u32[144,128]{1,0:T(1,128)}', space=vmem, size = 0x12000, scoped, tag = 'internal scratch']
  %s0 = inlined_call_operand.hbm [shape: f32[16,128], index: 0, kind: input, shape index: {}]
  %s1 = inlined_call_operand.hbm [shape: f32[16,128], index: 1, kind: input, shape index: {}]
  %s2 = inlined_call_operand.hbm [shape: f32[16,128], index: 2, kind: output, shape index: {}]
  %s3 = sld [smem:[#allocation0]]
  $region34: #{tpu_custom_call.1} parent=0
    _
  %s5 = ssub.s32 1, %s3
  %s6 = scalar_select 0, %s5, %s3
  $region1: #{tpu_custom_call.1} parent=0
    #allocation2 [shape = 'u8[8192]{0}', space=vmem, size = 0x2000, scoped, tag = 'input window, operand 0, single buffered']
    #allocation3 [shape = 's32[1]{0}', space=sflag, size = 0x4, scoped, tag = 'scoped memory for tpu_custom_call.1']
    #allocation4 [shape = 's32[1]{0}', space=sflag, size = 0x4, scoped, tag = 'scoped memory for tpu_custom_call.1']
    #allocation5 [shape = 'u8[8192]{0}', space=vmem, size = 0x2000, scoped, tag = 'input window, operand 1, single buffered']
    #allocation6 [shape = 's32[1]{0}', space=sflag, size = 0x4, scoped, tag = 'scoped memory for tpu_custom_call.1']
    #allocation7 [shape = 'u8[8192]{0}', space=vmem, size = 0x2000, scoped, tag = 'output window, operand 0, single buffered']
    %7 = vsyncpa [#allocation3], 0
    %8 = vsyncpa [#allocation6], 0
    %9 = vsyncpa [#allocation4], 0
    // Predicated region
    $region2: #{tpu_custom_call.1} parent=1 // pred_check
      _
    $region3: #{tpu_custom_call.1} parent=1 // pred_check_branch
      %11 = sbr.rel (0) target = $region5
    $region4: #{tpu_custom_call.1} parent=1 // pred_region
      %s12 = sadd.s32 0, 0
      %p13 = scmp.lt.s32.totalorder %s12, 0
      %s14 = scalar_select %p13, %s12, 0
      %s15 = smul.u32 2, %s14
      %s17 = ssub.s32 256, 256
      %18 = vsyncadd [#allocation3], %s17
      %s19 = smul.addr %s15, 128
      %s20 = scalar_lea.hbm %s0, %s19
      %s21 = sshll.u32 [#allocation2], 4
      %s22 = int_to_ptr.vmem [resolvable:$true] %s21
      %27 = dma.hbm_to_vmem [thread:$0]  %s20, 256, %s22, [#allocation3], 128, 128, 8
    $region5: #{tpu_custom_call.1} parent=1 // pred_fallthru
      _
    // Predicated region
    $region6: #{tpu_custom_call.1} parent=1 // pred_check
      _
    $region7: #{tpu_custom_call.1} parent=1 // pred_check_branch
      %29 = sbr.rel (0) target = $region9
    $region8: #{tpu_custom_call.1} parent=1 // pred_region
      %s30 = sadd.s32 0, 0
      %p31 = scmp.lt.s32.totalorder %s30, 0
      %s32 = scalar_select %p31, %s30, 0
      %s33 = smul.u32 2, %s32
      %s35 = ssub.s32 256, 256
      %36 = vsyncadd [#allocation6], %s35
      %s37 = smul.addr %s33, 128
      %s38 = scalar_lea.hbm %s1, %s37
      %s39 = sshll.u32 [#allocation5], 4
      %s40 = int_to_ptr.vmem [resolvable:$true] %s39
      %45 = dma.hbm_to_vmem [thread:$0]  %s38, 256, %s40, [#allocation6], 128, 128, 8
    $region9: #{tpu_custom_call.1} parent=1 // pred_fallthru
      _
    // Predicated region
    $region10: #{tpu_custom_call.1} parent=1 // pred_check
      _
    $region11: #{tpu_custom_call.1} parent=1 // pred_check_branch
      %47 = sbr.rel (0) target = $region13
    $region12: #{tpu_custom_call.1} parent=1 // pred_region
      %48 = dma.done [#allocation3], 256
    $region13: #{tpu_custom_call.1} parent=1 // pred_fallthru
      _
    // Predicated region
    $region14: #{tpu_custom_call.1} parent=1 // pred_check
      _
    $region15: #{tpu_custom_call.1} parent=1 // pred_check_branch
      %50 = sbr.rel (0) target = $region17
    $region16: #{tpu_custom_call.1} parent=1 // pred_region
      %51 = dma.done [#allocation6], 256
    $region17: #{tpu_custom_call.1} parent=1 // pred_fallthru
      _
    %s52 = sadd.s32 0, 0
    %p53 = scmp.lt.s32.totalorder %s52, 0
    %s54 = scalar_select %p53, %s52, 0
    %s55 = smul.u32 2, %s54
    %s56 = sadd.s32 0, 0
    %p57 = scmp.lt.s32.totalorder %s56, 0
    %s58 = scalar_select %p57, %s56, 0
    %s59 = smul.u32 2, %s58
    %s60 = sadd.s32 0, 0
    %p61 = scmp.eq.s32.totalorder 0, 0
    // Predicated region
    $region18: #{tpu_custom_call.1} parent=1 // pred_check
      %p62 = pneg %p61
    $region19: #{tpu_custom_call.1} parent=1 // pred_check_branch
      %64 = sbr.rel (%p62) target = $region21
    $region20: #{tpu_custom_call.1} parent=1 // pred_region
      %65 = vst [vmem:[#allocation7] sm:$0xff] 0.0
      %66 = vst [vmem:[#allocation7 + $0x8] sm:$0xff] 0.0
    $region21: #{tpu_custom_call.1} parent=1 // pred_fallthru
      _
    %p67 = scmp.lt.s32.totalorder %s60, 1
    // Predicated region
    $region22: #{tpu_custom_call.1} parent=1 // pred_check
      %p68 = pneg %p67
    $region23: #{tpu_custom_call.1} parent=1 // pred_check_branch
      %70 = sbr.rel (%p68) target = $region25
    $region24: #{tpu_custom_call.1} parent=1 // pred_region
      %v71 = vld [vmem:[#allocation5] sm:$0xff]
      %v72 = vld [vmem:[#allocation5 + $0x8] sm:$0xff]
      %v73 = vld [vmem:[#allocation2] sm:$0xff]
      %v74 = vld [vmem:[#allocation2 + $0x8] sm:$0xff]
      %v75 = vsub.f32 %v71, %v73
      %v76 = vsub.f32 %v72, %v74
      %v77 = vmul.f32 %v75, %v75
      %v78 = vmul.f32 %v76, %v76
      %v79 = vadd.f32 %v77, 0.0
      %v80 = vadd.f32 %v78, 0.0
      %v81 = vld [vmem:[#allocation7] sm:$0xff]
      %v82 = vld [vmem:[#allocation7 + $0x8] sm:$0xff]
      %v83 = vadd.f32 %v81, %v79
      %v84 = vadd.f32 %v82, %v80
      %85 = vst [vmem:[#allocation7] sm:$0xff] %v83
      %86 = vst [vmem:[#allocation7 + $0x8] sm:$0xff] %v84
    $region25: #{tpu_custom_call.1} parent=1 // pred_fallthru
      _
    // Predicated region
    $region26: #{tpu_custom_call.1} parent=1 // pred_check
      _
    $region27: #{tpu_custom_call.1} parent=1 // pred_check_branch
      %88 = sbr.rel (0) target = $region29
    $region28: #{tpu_custom_call.1} parent=1 // pred_region
      %s90 = ssub.s32 256, 256
      %91 = vsyncadd [#allocation4], %s90
      %s92 = sshll.u32 [#allocation7], 4
      %s93 = int_to_ptr.vmem [resolvable:$true] %s92
      %98 = dma.vmem_to_hbm [thread:$0]  %s93, 256, %s2, [#allocation4], 128, 128, 8
    $region29: #{tpu_custom_call.1} parent=1 // pred_fallthru
      _
    // Predicated region
    $region30: #{tpu_custom_call.1} parent=1 // pred_check
      _
    $region31: #{tpu_custom_call.1} parent=1 // pred_check_branch
      %100 = sbr.rel (0) target = $region33
    $region32: #{tpu_custom_call.1} parent=1 // pred_region
      %101 = dma.done [#allocation4], 256
    $region33: #{tpu_custom_call.1} parent=1 // pred_fallthru
      _
    %102 = vsyncpa [#allocation3], 1
    %103 = vsyncpa [#allocation6], 1
    %104 = vsyncpa [#allocation4], 1

</llo_original>
